<compile_context>
chip_gen: v6e
topology: v6e:2x2x1
jax: 0.10.0
libtpu: 0.0.40
codegen_flags: <defaults>
</compile_context>

<pallas_src>
import jax
import jax.numpy as jnp
from jax import lax
from jax.experimental import pallas as pl
from jax.experimental.pallas import tpu as pltpu


def _round_up(x, m):
    return ((x + m - 1) // m) * m


def _pick_tile(dim, unit, target):
    """Largest multiple of `unit` that divides `dim` (itself a multiple of
    `unit`) and is <= target.  Avoids tile-sized over-padding on awkward dims
    by shrinking the tile instead of growing the array."""
    target = max(unit, min(target, dim))
    best = unit
    for t in range(unit, target + 1, unit):
        if dim % t == 0:
            best = t
    return best


# ---------------------------------------------------------------------------
# Kernel 1: frequency-domain adjustment (elementwise, window-only)
# ---------------------------------------------------------------------------
def _freq_adjust_kernel(fre_ref, fim_ref, gc_ref, gs_ref, ore_ref, oim_ref):
    """PyTorch does:  new = |gain * |F||  *  exp(i * (angle(F) + phase))
    which is algebraically identical to:  new = |gain| * F * exp(i * phase).
    With F = re + i*im and gc = |gain|*cos(phase), gs = |gain|*sin(phase):
        new_re = re*gc - im*gs
        new_im = re*gs + im*gc
    (gc/gs are parameter-only and folded outside the kernel)."""
    re = fre_ref[...]
    im = fim_ref[...]
    gc = gc_ref[...]
    gs = gs_ref[...]
    ore_ref[...] = re * gc - im * gs
    oim_ref[...] = re * gs + im * gc


def freq_adjust(f_re, f_im, gc, gs, *, tile_r=256, tile_c=512):
    """Elementwise complex multiply on the (2T x 2T) low-frequency window only."""
    R, C = f_re.shape
    Rp = _round_up(R, 8)
    Cp = _round_up(C, 128)
    tr = _pick_tile(Rp, 8, tile_r)
    tc = _pick_tile(Cp, 128, tile_c)     # 256x512 f32 x 6 operands x 2 bufs ~ 6 MiB
                                         # -> safe under v5e's 16 MiB scoped VMEM.
    if (Rp, Cp) != (R, C):
        pad = ((0, Rp - R), (0, Cp - C))
        f_re = jnp.pad(f_re, pad)
        f_im = jnp.pad(f_im, pad)
        gc = jnp.pad(gc, pad)
        gs = jnp.pad(gs, pad)

    spec = pl.BlockSpec((tr, tc), lambda i, j: (i, j))
    n_el = Rp * Cp
    o_re, o_im = pl.pallas_call(
        _freq_adjust_kernel,
        out_shape=(jax.ShapeDtypeStruct((Rp, Cp), jnp.float32),
                   jax.ShapeDtypeStruct((Rp, Cp), jnp.float32)),
        grid_spec=pltpu.PrefetchScalarGridSpec(
            num_scalar_prefetch=0,
            grid=(Rp // tr, Cp // tc),
            in_specs=[spec, spec, spec, spec],
            out_specs=(spec, spec),
        ),
        compiler_params=pltpu.CompilerParams(
            dimension_semantics=("parallel", "parallel")),
        cost_estimate=pl.CostEstimate(
            flops=6 * n_el, transcendentals=0,
            bytes_accessed=6 * n_el * 4),
    )(f_re, f_im, gc, gs)
    return o_re[:R, :C], o_im[:R, :C]


# ---------------------------------------------------------------------------
# Kernel 2: linear  out = x @ W^T + bias,  with W kept as (O, I) (no transpose)
# ---------------------------------------------------------------------------
_NT_DIMS = (((1,), (1,)), ((), ()))   # contract last dims of lhs and rhs


def _linear_kernel(x_ref, w_ref, b_ref, o_ref, acc_ref):
    k = pl.program_id(2)

    @pl.when(k == 0)
    def _():
        acc_ref[...] = jnp.zeros_like(acc_ref)

    acc_ref[...] += lax.dot_general(x_ref[...], w_ref[...],
                                    dimension_numbers=_NT_DIMS,
                                    preferred_element_type=jnp.float32)

    @pl.when(k == pl.num_programs(2) - 1)
    def _():
        o_ref[...] = (acc_ref[...] + b_ref[...]).astype(o_ref.dtype)


def _linear_kernel_single_k(x_ref, w_ref, b_ref, o_ref):
    # Small-batch fast path: whole K in one step -> no accumulator RMW.
    o_ref[...] = (lax.dot_general(x_ref[...], w_ref[...],
                                  dimension_numbers=_NT_DIMS,
                                  preferred_element_type=jnp.float32)
                  + b_ref[...]).astype(o_ref.dtype)


def pallas_linear(x, w, b, *, tm_target=512, tn_target=512, tk_target=512):
    """out = x @ w.T + b  with x:(B, I), w:(O, I) (torch.nn.Linear layout), b:(O,)."""
    B, I = x.shape
    O, I2 = w.shape
    assert I == I2, "in_features mismatch"

    # Pad only to the (8, 128) layout minimum (not to a full tile).
    Bp = _round_up(B, 8)
    Op = _round_up(O, 128)
    Ip = _round_up(I, 128)

    # Small-batch fast path: weight-streaming (DMA) bound; fold the whole K dim
    # into a single step when it fits comfortably in VMEM.
    if Bp <= 64:
        tk_target = max(tk_target, min(Ip, 2048))

    tm = _pick_tile(Bp, 8, tm_target)
    tk = _pick_tile(Ip, 128, tk_target)
    tn_cap = tn_target
    if Bp // tm == 1 and Op >= 256:
        # Keep >=2 blocks on a "parallel" axis so both v7x TensorCores get work.
        tn_cap = min(tn_cap, Op // 2)
    tn = _pick_tile(Op, 128, tn_cap)
    # Working set with 512^3 tiles is ~7 MiB (double-buffered) -> fits the
    # default scoped-VMEM budget on v5e (16 MiB) and v6e/v7x (32 MiB); no
    # vmem_limit_bytes override needed.

    if (Bp, Ip) != (B, I):
        x = jnp.pad(x, ((0, Bp - B), (0, Ip - I)))
    if (Op, Ip) != (O, I):
        w = jnp.pad(w, ((0, Op - O), (0, Ip - I)))
    b2 = b.astype(jnp.float32).reshape(1, O)
    if Op != O:
        b2 = jnp.pad(b2, ((0, 0), (0, Op - O)))

    n_i, n_j, n_k = Bp // tm, Op // tn, Ip // tk
    flops = 2 * Bp * Op * Ip
    # Includes K-panel re-reads across the i/j grid (review note).
    bytes_accessed = 4 * (Bp * Ip * n_j + Op * Ip * n_i + Bp * Op + Op)

    if n_k == 1:
        out = pl.pallas_call(
            _linear_kernel_single_k,
            out_shape=jax.ShapeDtypeStruct((Bp, Op), x.dtype),
            grid_spec=pltpu.PrefetchScalarGridSpec(
                num_scalar_prefetch=0,
                grid=(n_i, n_j),
                in_specs=[pl.BlockSpec((tm, tk), lambda i, j: (i, 0)),
                          pl.BlockSpec((tn, tk), lambda i, j: (j, 0)),
                          pl.BlockSpec((1, tn), lambda i, j: (0, j))],
                out_specs=pl.BlockSpec((tm, tn), lambda i, j: (i, j)),
            ),
            compiler_params=pltpu.CompilerParams(
                dimension_semantics=("parallel", "parallel")),
            cost_estimate=pl.CostEstimate(flops=flops, transcendentals=0,
                                          bytes_accessed=bytes_accessed),
        )(x, w, b2)
    else:
        out = pl.pallas_call(
            _linear_kernel,
            out_shape=jax.ShapeDtypeStruct((Bp, Op), x.dtype),
            grid_spec=pltpu.PrefetchScalarGridSpec(
                num_scalar_prefetch=0,
                grid=(n_i, n_j, n_k),
                in_specs=[pl.BlockSpec((tm, tk), lambda i, j, k: (i, k)),
                          pl.BlockSpec((tn, tk), lambda i, j, k: (j, k)),
                          pl.BlockSpec((1, tn), lambda i, j, k: (0, j))],
                out_specs=pl.BlockSpec((tm, tn), lambda i, j, k: (i, j)),
                scratch_shapes=[pltpu.VMEM((tm, tn), jnp.float32)],
            ),
            compiler_params=pltpu.CompilerParams(
                dimension_semantics=("parallel", "parallel", "arbitrary")),
            cost_estimate=pl.CostEstimate(flops=flops, transcendentals=0,
                                          bytes_accessed=bytes_accessed),
        )(x, w, b2)

    if (Bp, Op) != (B, O):
        out = out[:B, :O]
    return out


# ---------------------------------------------------------------------------
# Module-equivalent forward
# ---------------------------------------------------------------------------
def fft_linear_forward(x, weight, bias, gain_vec, phase_offset, threshold):
    """Equivalent of FFTLinearLayer.forward(attn, x) with attn.weight/bias given."""
    O, I = weight.shape
    T = threshold
    n = 2 * T
    assert n <= O and n <= I, "2*threshold window must fit inside the weight"

    # --- TODO(synk): fft2/ifft2 have no Pallas equivalent; they stay in XLA. ---
    F = jnp.fft.fft2(weight.astype(jnp.float32))          # (O, I) complex64

    if T > 0:
        # create_symmetric_matrix(): scatter upper-tri vector, symmetrize
        # (parameter-scale work, 2T x 2T only; no full-size planes).
        r, c = jnp.triu_indices(n)
        sym = jnp.zeros((n, n), jnp.float32).at[r, c].set(gain_vec)
        sym = sym + sym.T - jnp.diag(jnp.diag(sym))
        g = jnp.abs(sym)
        gc = g * jnp.cos(phase_offset)
        gs = g * jnp.sin(phase_offset)

        # fftshift/ifftshift folded away:
        #   ifftshift(fftshift(F) * g_shifted) == F * ifftshift(g_shifted)
        # and g_shifted == 1 outside the centred window, so only the 2T x 2T
        # entries at the wrapped corners of the *unshifted* F change.
        # Window row w (0 <= w < 2T) maps to F row (w - T) mod O (cols likewise).
        Fw = jnp.concatenate([
            jnp.concatenate([F[O - T:, I - T:], F[O - T:, :T]], axis=1),
            jnp.concatenate([F[:T,     I - T:], F[:T,     :T]], axis=1)], axis=0)

        # Hot path 1 (Pallas, VPU): complex multiply on the window only.
        nw_re, nw_im = freq_adjust(jnp.real(Fw), jnp.imag(Fw), gc, gs)
        Fw_new = lax.complex(nw_re, nw_im)

        # Scatter back (4 static dynamic-update-slices; in-place under jit).
        F = F.at[O - T:, I - T:].set(Fw_new[:T, :T])
        F = F.at[O - T:, :T].set(Fw_new[:T, T:])
        F = F.at[:T, I - T:].set(Fw_new[T:, :T])
        F = F.at[:T, :T].set(Fw_new[T:, T:])

    # filt.to(orig_dtype) on a complex tensor keeps the real part.
    filt = jnp.real(jnp.fft.ifft2(F)).astype(x.dtype)      # (O, I), never transposed

    # Hot path 2 (Pallas, MXU): NT matmul with filt kept as (O, I).
    return pallas_linear(x, filt, bias)


# ---------------------------------------------------------------------------
# Pure-JAX reference mirroring the PyTorch code literally (shift + abs/angle).
# ---------------------------------------------------------------------------
def _reference(x, weight, bias, gain_vec, phase_offset, threshold):
    O, I = weight.shape
    n = 2 * threshold
    r, c = jnp.triu_indices(n)
    sym = jnp.zeros((n, n), jnp.float32).at[r, c].set(gain_vec)
    sym = sym + sym.T - jnp.diag(jnp.diag(sym))
    crow, ccol = O // 2, I // 2
    gain_full = jnp.ones((O, I), jnp.float32).at[
        crow - threshold:crow + threshold,
        ccol - threshold:ccol + threshold].set(sym)
    phase_full = jnp.zeros((O, I), jnp.float32).at[
        crow - threshold:crow + threshold,
        ccol - threshold:ccol + threshold].set(phase_offset)
    F = jnp.fft.fftshift(jnp.fft.fft2(weight.astype(jnp.float32)), axes=(-2, -1))
    amp = jnp.abs(gain_full * jnp.abs(F))
    ang = phase_full + jnp.angle(F)
    G = jnp.fft.ifftshift(amp * jnp.exp(1j * ang), axes=(-2, -1))
    filt = jnp.real(jnp.fft.ifft2(G)).astype(x.dtype)
    return (jnp.dot(x, filt.T, precision=jax.lax.Precision.HIGHEST)
            + bias.astype(x.dtype))


if __name__ == "__main__":
    fwd = jax.jit(fft_linear_forward, static_argnames=("threshold",))

    def run_case(in_features, out_features, threshold, batch, key,
                 w_scale=0.1, tol=5e-4):
        n = 2 * threshold
        k1, k2, k3, k4, k5 = jax.random.split(key, 5)
        weight = jax.random.normal(k1, (out_features, in_features), jnp.float32) * w_scale
        bias = jax.random.normal(k2, (out_features,), jnp.float32) * 0.1
        x = jax.random.normal(k3, (batch, in_features), jnp.float32)
        # Non-trivial parameters so the window placement / adjustment is tested.
        gain_vec = 1.0 + 0.3 * jax.random.normal(k4, (n * (n + 1) // 2,), jnp.float32)
        phase_offset = 0.5 * jax.random.normal(k5, (n, n), jnp.float32)

        out = jax.block_until_ready(
            fwd(x, weight, bias, gain_vec, phase_offset, threshold=threshold))
        ref = jax.block_until_ready(
            _reference(x, weight, bias, gain_vec, phase_offset, threshold))
        assert out.shape == (batch, out_features)
        err = float(jnp.max(jnp.abs(out - ref)))
        assert jnp.allclose(out, ref, atol=tol, rtol=tol), f"max abs err {err}"

    key = jax.random.PRNGKey(0)
    k_a, k_b = jax.random.split(key)
    # Small config: exercises the single-K-step small-batch fast path.
    run_case(in_features=32, out_features=16, threshold=2, batch=8, key=k_a)
    # Larger config: exercises multi-step K accumulation + divisor-based tiling.
    run_case(in_features=640, out_features=384, threshold=8, batch=128, key=k_b,
             w_scale=0.05)

    print("KERNEL_OK")
</pallas_src>

<mosaic_0001>
module attributes {stable_mosaic.version = 11 : i64} {
  func.func private @main(%arg0: i32) attributes {dimension_semantics = [#tpu.dimension_semantics<core_parallel>], iteration_bounds = array<i64: 2>, tpu.core_type = #tpu.core_type<sc_scalar_subcore>, window_params = []} {
    return
  }
}

module attributes {stable_mosaic.version = 11 : i64} {
  func.func private @main(%arg0: i32) attributes {dimension_semantics = [#tpu.dimension_semantics<core_parallel>], iteration_bounds = array<i64: 2>, tpu.core_type = #tpu.core_type<sc_scalar_subcore>, window_params = []} {
    return
  }
}

module attributes {stable_mosaic.version = 11 : i64} {
  func.func @_freq_adjust_kernel(%arg0: i32, %arg1: i32, %arg2: memref<8x128xf32, #tpu.memory_space<vmem>>, %arg3: memref<8x128xf32, #tpu.memory_space<vmem>>, %arg4: memref<8x128xf32, #tpu.memory_space<vmem>>, %arg5: memref<8x128xf32, #tpu.memory_space<vmem>>, %arg6: memref<8x128xf32, #tpu.memory_space<vmem>>, %arg7: memref<8x128xf32, #tpu.memory_space<vmem>>) attributes {dimension_semantics = [#tpu.dimension_semantics<parallel>, #tpu.dimension_semantics<parallel>], iteration_bounds = array<i64: 1, 1>, scalar_prefetch = 0 : i64, scratch_operands = 0 : i64, tpu.core_type = #tpu.core_type<tc>, window_params = [{transform_indices = @transform_0, window_bounds = array<i64: 8, 128>}, {transform_indices = @transform_1, window_bounds = array<i64: 8, 128>}, {transform_indices = @transform_2, window_bounds = array<i64: 8, 128>}, {transform_indices = @transform_3, window_bounds = array<i64: 8, 128>}, {transform_indices = @transform_4, window_bounds = array<i64: 8, 128>}, {transform_indices = @transform_5, window_bounds = array<i64: 8, 128>}]} {
    %c0 = arith.constant 0 : index
    %c0_0 = arith.constant 0 : index
    %0 = vector.load %arg2[%c0, %c0_0] : memref<8x128xf32, #tpu.memory_space<vmem>>, vector<8x128xf32>
    %c0_1 = arith.constant 0 : index
    %c0_2 = arith.constant 0 : index
    %1 = vector.load %arg3[%c0_1, %c0_2] : memref<8x128xf32, #tpu.memory_space<vmem>>, vector<8x128xf32>
    %c0_3 = arith.constant 0 : index
    %c0_4 = arith.constant 0 : index
    %2 = vector.load %arg4[%c0_3, %c0_4] : memref<8x128xf32, #tpu.memory_space<vmem>>, vector<8x128xf32>
    %c0_5 = arith.constant 0 : index
    %c0_6 = arith.constant 0 : index
    %3 = vector.load %arg5[%c0_5, %c0_6] : memref<8x128xf32, #tpu.memory_space<vmem>>, vector<8x128xf32>
    %4 = arith.mulf %0, %2 : vector<8x128xf32>
    %5 = arith.mulf %1, %3 : vector<8x128xf32>
    %6 = arith.subf %4, %5 : vector<8x128xf32>
    %c0_7 = arith.constant 0 : index
    %c0_8 = arith.constant 0 : index
    %7 = vector.load %arg6[%c0_7, %c0_8] : memref<8x128xf32, #tpu.memory_space<vmem>>, vector<8x128xf32>
    tpu.vector_store %arg6[%c0_7, %c0_8], %6 {strides = array<i32>} : memref<8x128xf32, #tpu.memory_space<vmem>>, vector<8x128xf32>,
    %8 = arith.mulf %0, %3 : vector<8x128xf32>
    %9 = arith.mulf %1, %2 : vector<8x128xf32>
    %10 = arith.addf %8, %9 : vector<8x128xf32>
    %c0_9 = arith.constant 0 : index
    %c0_10 = arith.constant 0 : index
    %11 = vector.load %arg7[%c0_9, %c0_10] : memref<8x128xf32, #tpu.memory_space<vmem>>, vector<8x128xf32>
    tpu.vector_store %arg7[%c0_9, %c0_10], %10 {strides = array<i32>} : memref<8x128xf32, #tpu.memory_space<vmem>>, vector<8x128xf32>,
    return
  }
  func.func @transform_0(%arg0: i32, %arg1: i32) -> (i32, i32) {
    %c0_i32 = arith.constant 0 : i32
    return %arg0, %arg1 : i32, i32
  }
  func.func @transform_1(%arg0: i32, %arg1: i32) -> (i32, i32) {
    %c0_i32 = arith.constant 0 : i32
    return %arg0, %arg1 : i32, i32
  }
  func.func @transform_2(%arg0: i32, %arg1: i32) -> (i32, i32) {
    %c0_i32 = arith.constant 0 : i32
    return %arg0, %arg1 : i32, i32
  }
  func.func @transform_3(%arg0: i32, %arg1: i32) -> (i32, i32) {
    %c0_i32 = arith.constant 0 : i32
    return %arg0, %arg1 : i32, i32
  }
  func.func @transform_4(%arg0: i32, %arg1: i32) -> (i32, i32) {
    %c0_i32 = arith.constant 0 : i32
    return %arg0, %arg1 : i32, i32
  }
  func.func @transform_5(%arg0: i32, %arg1: i32) -> (i32, i32) {
    %c0_i32 = arith.constant 0 : i32
    return %arg0, %arg1 : i32, i32
  }
}

module attributes {stable_mosaic.version = 11 : i64} {
  func.func @_linear_kernel_single_k(%arg0: i32, %arg1: i32, %arg2: memref<8x128xf32, #tpu.memory_space<vmem>>, %arg3: memref<128x128xf32, #tpu.memory_space<vmem>>, %arg4: memref<1x128xf32, #tpu.memory_space<vmem>>, %arg5: memref<8x128xf32, #tpu.memory_space<vmem>>) attributes {dimension_semantics = [#tpu.dimension_semantics<parallel>, #tpu.dimension_semantics<parallel>], iteration_bounds = array<i64: 1, 1>, scalar_prefetch = 0 : i64, scratch_operands = 0 : i64, tpu.core_type = #tpu.core_type<tc>, window_params = [{transform_indices = @transform_0, window_bounds = array<i64: 8, 128>}, {transform_indices = @transform_1, window_bounds = array<i64: 128, 128>}, {transform_indices = @transform_2, window_bounds = array<i64: 1, 128>}, {transform_indices = @transform_3, window_bounds = array<i64: 8, 128>}]} {
    %c0 = arith.constant 0 : index
    %c0_0 = arith.constant 0 : index
    %0 = vector.load %arg2[%c0, %c0_0] : memref<8x128xf32, #tpu.memory_space<vmem>>, vector<8x128xf32>
    %c0_1 = arith.constant 0 : index
    %c0_2 = arith.constant 0 : index
    %1 = vector.load %arg3[%c0_1, %c0_2] : memref<128x128xf32, #tpu.memory_space<vmem>>, vector<128x128xf32>
    %cst = arith.constant dense<0.000000e+00> : vector<8x128xf32>
    %2 = tpu.matmul %0, %1, %cst {dimension_numbers = #tpu.dot_dimension_numbers<[1], [1], [0], [0], [0, 0, 1, 0], [], []>} : vector<8x128xf32>, vector<128x128xf32>, vector<8x128xf32> -> vector<8x128xf32>
    %c0_3 = arith.constant 0 : index
    %c0_4 = arith.constant 0 : index
    %3 = vector.load %arg4[%c0_3, %c0_4] : memref<1x128xf32, #tpu.memory_space<vmem>>, vector<1x128xf32>
    %4 = vector.broadcast %3 : vector<1x128xf32> to vector<8x128xf32>
    %5 = arith.addf %2, %4 : vector<8x128xf32>
    %c0_5 = arith.constant 0 : index
    %c0_6 = arith.constant 0 : index
    %6 = vector.load %arg5[%c0_5, %c0_6] : memref<8x128xf32, #tpu.memory_space<vmem>>, vector<8x128xf32>
    tpu.vector_store %arg5[%c0_5, %c0_6], %5 {strides = array<i32>} : memref<8x128xf32, #tpu.memory_space<vmem>>, vector<8x128xf32>,
    return
  }
  func.func @transform_0(%arg0: i32, %arg1: i32) -> (i32, i32) {
    %c0_i32 = arith.constant 0 : i32
    %c0_i32_0 = arith.constant 0 : i32
    return %arg0, %c0_i32 : i32, i32
  }
  func.func @transform_1(%arg0: i32, %arg1: i32) -> (i32, i32) {
    %c0_i32 = arith.constant 0 : i32
    %c0_i32_0 = arith.constant 0 : i32
    return %arg1, %c0_i32 : i32, i32
  }
  func.func @transform_2(%arg0: i32, %arg1: i32) -> (i32, i32) {
    %c0_i32 = arith.constant 0 : i32
    %c0_i32_0 = arith.constant 0 : i32
    return %c0_i32, %arg1 : i32, i32
  }
  func.func @transform_3(%arg0: i32, %arg1: i32) -> (i32, i32) {
    %c0_i32 = arith.constant 0 : i32
    return %arg0, %arg1 : i32, i32
  }
}

</mosaic_0001>

<llo_original>
// kernel: fft_linear_forward.2
$region0: #{fft_linear_forward.2}
  #allocation0 [shape = 'u32[]', space=smem, size = 0x4, offset = 0x4, fixed_abs, tag = 'smem constant byte address 0x4 - core index']
  #allocation1 [shape = 'u32[144,128]{1,0:T(1,128)}', space=vmem, size = 0x12000, scoped, tag = 'internal scratch']
  %s0 = inlined_call_operand.vmem [shape: f32[8,128], index: 0, kind: input, shape index: {}]
  %s1 = inlined_call_operand.vmem [shape: f32[8,128], index: 1, kind: input, shape index: {}]
  %s2 = inlined_call_operand.vmem [shape: f32[8,128], index: 2, kind: input, shape index: {}]
  %s3 = inlined_call_operand.vmem [shape: f32[8,128], index: 3, kind: input, shape index: {}]
  %s4 = inlined_call_operand.vmem [shape: f32[8,128], index: 4, kind: output, shape index: {0}]
  %s5 = inlined_call_operand.vmem [shape: f32[8,128], index: 5, kind: output, shape index: {1}]
  %6 = xla_tuple %s4, %s5
  %s7 = sld [smem:[#allocation0]]
  $region34: #{fft_linear_forward.2} parent=0
    _
  %s9 = ssub.s32 1, %s7
  %s10 = scalar_select 0, %s9, %s7
  // Predicated region
  $region2: #{fft_linear_forward.2} parent=0 // pred_check
    _
  $region3: #{fft_linear_forward.2} parent=0 // pred_check_branch
    %12 = sbr.rel (0) target = $region5
  $region4: #{fft_linear_forward.2} parent=0 // pred_region
    _
  $region5: #{fft_linear_forward.2} parent=0 // pred_fallthru
    _
  // Predicated region
  $region6: #{fft_linear_forward.2} parent=0 // pred_check
    _
  $region7: #{fft_linear_forward.2} parent=0 // pred_check_branch
    %14 = sbr.rel (0) target = $region9
  $region8: #{fft_linear_forward.2} parent=0 // pred_region
    _
  $region9: #{fft_linear_forward.2} parent=0 // pred_fallthru
    _
  // Predicated region
  $region10: #{fft_linear_forward.2} parent=0 // pred_check
    _
  $region11: #{fft_linear_forward.2} parent=0 // pred_check_branch
    %16 = sbr.rel (0) target = $region13
  $region12: #{fft_linear_forward.2} parent=0 // pred_region
    _
  $region13: #{fft_linear_forward.2} parent=0 // pred_fallthru
    _
  // Predicated region
  $region14: #{fft_linear_forward.2} parent=0 // pred_check
    _
  $region15: #{fft_linear_forward.2} parent=0 // pred_check_branch
    %18 = sbr.rel (0) target = $region17
  $region16: #{fft_linear_forward.2} parent=0 // pred_region
    _
  $region17: #{fft_linear_forward.2} parent=0 // pred_fallthru
    _
  %v19 = vld [vmem:[%s0] sm:$0xff]
  %v20 = vld [vmem:[%s1] sm:$0xff]
  %v21 = vld [vmem:[%s2] sm:$0xff]
  %v22 = vld [vmem:[%s3] sm:$0xff]
  %v23 = vmul.f32 %v19, %v21
  %v24 = vmul.f32 %v20, %v22
  %v25 = vsub.f32 %v23, %v24
  %26 = vst [vmem:[%s4] sm:$0xff] %v25
  %v27 = vmul.f32 %v19, %v22
  %v28 = vmul.f32 %v20, %v21
  %v29 = vadd.f32 %v27, %v28
  %30 = vst [vmem:[%s5] sm:$0xff] %v29
  // Predicated region
  $region18: #{fft_linear_forward.2} parent=0 // pred_check
    _
  $region19: #{fft_linear_forward.2} parent=0 // pred_check_branch
    %32 = sbr.rel (0) target = $region21
  $region20: #{fft_linear_forward.2} parent=0 // pred_region
    _
  $region21: #{fft_linear_forward.2} parent=0 // pred_fallthru
    _
  // Predicated region
  $region22: #{fft_linear_forward.2} parent=0 // pred_check
    _
  $region23: #{fft_linear_forward.2} parent=0 // pred_check_branch
    %34 = sbr.rel (0) target = $region25
  $region24: #{fft_linear_forward.2} parent=0 // pred_region
    _
  $region25: #{fft_linear_forward.2} parent=0 // pred_fallthru
    _
  // Predicated region
  $region26: #{fft_linear_forward.2} parent=0 // pred_check
    _
  $region27: #{fft_linear_forward.2} parent=0 // pred_check_branch
    %36 = sbr.rel (0) target = $region29
  $region28: #{fft_linear_forward.2} parent=0 // pred_region
    _
  $region29: #{fft_linear_forward.2} parent=0 // pred_fallthru
    _
  // Predicated region
  $region30: #{fft_linear_forward.2} parent=0 // pred_check
    _
  $region31: #{fft_linear_forward.2} parent=0 // pred_check_branch
    %38 = sbr.rel (0) target = $region33
  $region32: #{fft_linear_forward.2} parent=0 // pred_region
    _
  $region33: #{fft_linear_forward.2} parent=0 // pred_fallthru
    _

// kernel: fft_linear_forward.3
$region0: #{fft_linear_forward.3}
  #allocation0 [shape = 'u32[]', space=smem, size = 0x4, offset = 0x4, fixed_abs, tag = 'smem constant byte address 0x4 - core index']
  #allocation1 [shape = 'u32[144,128]{1,0:T(1,128)}', space=vmem, size = 0x12000, scoped, tag = 'internal scratch']
  %s0 = inlined_call_operand.vmem [shape: f32[8,128], index: 0, kind: input, shape index: {}]
  %s1 = inlined_call_operand.vmem [shape: f32[128,128], index: 1, kind: input, shape index: {}]
  %s2 = inlined_call_operand.vmem [shape: f32[1,128], index: 2, kind: input, shape index: {}]
  %s3 = inlined_call_operand.hbm [shape: f32[8,128], index: 3, kind: output, shape index: {}]
  %s4 = sld [smem:[#allocation0]]
  $region22: #{fft_linear_forward.3} parent=0
    _
  %s6 = ssub.s32 1, %s4
  %s7 = scalar_select 0, %s6, %s4
  $region1: #{fft_linear_forward.3} parent=0
    #allocation2 [shape = 'u8[4096]{0}', space=vmem, size = 0x1000, scoped, tag = 'output window, operand 0, single buffered']
    #allocation3 [shape = 's32[1]{0}', space=sflag, size = 0x4, scoped, tag = 'scoped memory for fft_linear_forward.3']
    %8 = vsyncpa [#allocation3], 0
    // Predicated region
    $region2: #{fft_linear_forward.3} parent=1 // pred_check
      _
    $region3: #{fft_linear_forward.3} parent=1 // pred_check_branch
      %10 = sbr.rel (0) target = $region5
    $region4: #{fft_linear_forward.3} parent=1 // pred_region
      _
    $region5: #{fft_linear_forward.3} parent=1 // pred_fallthru
      _
    // Predicated region
    $region6: #{fft_linear_forward.3} parent=1 // pred_check
      _
    $region7: #{fft_linear_forward.3} parent=1 // pred_check_branch
      %12 = sbr.rel (0) target = $region9
    $region8: #{fft_linear_forward.3} parent=1 // pred_region
      _
    $region9: #{fft_linear_forward.3} parent=1 // pred_fallthru
      _
    // Predicated region
    $region10: #{fft_linear_forward.3} parent=1 // pred_check
      _
    $region11: #{fft_linear_forward.3} parent=1 // pred_check_branch
      %14 = sbr.rel (0) target = $region13
    $region12: #{fft_linear_forward.3} parent=1 // pred_region
      _
    $region13: #{fft_linear_forward.3} parent=1 // pred_fallthru
      _
    %v15 = vld [vmem:[%s0] sm:$0xff]
    %v16 = vld [vmem:[%s1] sm:$0xff]
    %v17 = vld [vmem:[%s1 + $0x8] sm:$0xff]
    %v18 = vld [vmem:[%s1 + $0x10] sm:$0xff]
    %v19 = vld [vmem:[%s1 + $0x18] sm:$0xff]
    %v20 = vld [vmem:[%s1 + $0x20] sm:$0xff]
    %v21 = vld [vmem:[%s1 + $0x28] sm:$0xff]
    %v22 = vld [vmem:[%s1 + $0x30] sm:$0xff]
    %v23 = vld [vmem:[%s1 + $0x38] sm:$0xff]
    %v24 = vld [vmem:[%s1 + $0x40] sm:$0xff]
    %v25 = vld [vmem:[%s1 + $0x48] sm:$0xff]
    %v26 = vld [vmem:[%s1 + $0x50] sm:$0xff]
    %v27 = vld [vmem:[%s1 + $0x58] sm:$0xff]
    %v28 = vld [vmem:[%s1 + $0x60] sm:$0xff]
    %v29 = vld [vmem:[%s1 + $0x68] sm:$0xff]
    %v30 = vld [vmem:[%s1 + $0x70] sm:$0xff]
    %v31 = vld [vmem:[%s1 + $0x78] sm:$0xff]
    %v32 = vld [vmem:[%s2] sm:$0x1]
    %v34 = vlaneseq
    %v35 = vshrl.u32 %v34, 7
    %v36 = vsub.s32 0, %v35
    %v37 = vrot.slane %v32, %v36
    %39 = vmatprep.subr.mxu0 0.0
    %40 = vmatpush1.xpose.msra.mxu0 %v31
    %41 = vmatprep.subr.mxu0 0.0
    %42 = vmatpush1.xpose.msra.mxu0 %v30
    %43 = vmatprep.subr.mxu0 0.0
    %44 = vmatpush1.xpose.msra.mxu0 %v29
    %45 = vmatprep.subr.mxu0 0.0
    %46 = vmatpush1.xpose.msra.mxu0 %v28
    %47 = vmatprep.subr.mxu0 0.0
    %48 = vmatpush1.xpose.msra.mxu0 %v27
    %49 = vmatprep.subr.mxu0 0.0
    %50 = vmatpush1.xpose.msra.mxu0 %v26
    %51 = vmatprep.subr.mxu0 0.0
    %52 = vmatpush1.xpose.msra.mxu0 %v25
    %53 = vmatprep.subr.mxu0 0.0
    %54 = vmatpush1.xpose.msra.mxu0 %v24
    %55 = vmatprep.subr.mxu0 0.0
    %56 = vmatpush1.xpose.msra.mxu0 %v23
    %57 = vmatprep.subr.mxu0 0.0
    %58 = vmatpush1.xpose.msra.mxu0 %v22
    %59 = vmatprep.subr.mxu0 0.0
    %60 = vmatpush1.xpose.msra.mxu0 %v21
    %61 = vmatprep.subr.mxu0 0.0
    %62 = vmatpush1.xpose.msra.mxu0 %v20
    %63 = vmatprep.subr.mxu0 0.0
    %64 = vmatpush1.xpose.msra.mxu0 %v19
    %65 = vmatprep.subr.mxu0 0.0
    %66 = vmatpush1.xpose.msra.mxu0 %v18
    %67 = vmatprep.subr.mxu0 0.0
    %68 = vmatpush1.xpose.msra.mxu0 %v17
    %69 = vmatprep.subr.mxu0 0.0
    %70 = vmatpush1.xpose.msra.mxu0 %v16
    %71 = vmatprep.subr.mxu0 0.0
    %72 = vmatpush2.xpose.msra.mxu0 0.0
    %73 = vmatprep.subr.mxu0 0.0
    %74 = vmatpush2.xpose.msra.mxu0 0.0
    %75 = vmatprep.subr.mxu0 0.0
    %76 = vmatpush2.xpose.msra.mxu0 0.0
    %77 = vmatprep.subr.mxu0 0.0
    %78 = vmatpush2.xpose.msra.mxu0 0.0
    %79 = vmatprep.subr.mxu0 0.0
    %80 = vmatpush2.xpose.msra.mxu0 0.0
    %81 = vmatprep.subr.mxu0 0.0
    %82 = vmatpush2.xpose.msra.mxu0 0.0
    %83 = vmatprep.subr.mxu0 0.0
    %84 = vmatpush2.xpose.msra.mxu0 0.0
    %85 = vmatprep.subr.mxu0 0.0
    %86 = vmatpush2.xpose.msra.mxu0 0.0
    %87 = vmatprep.subr.mxu0 0.0
    %88 = vmatpush2.xpose.msra.mxu0 0.0
    %89 = vmatprep.subr.mxu0 0.0
    %90 = vmatpush2.xpose.msra.mxu0 0.0
    %91 = vmatprep.subr.mxu0 0.0
    %92 = vmatpush2.xpose.msra.mxu0 0.0
    %93 = vmatprep.subr.mxu0 0.0
    %94 = vmatpush2.xpose.msra.mxu0 0.0
    %95 = vmatprep.subr.mxu0 0.0
    %96 = vmatpush2.xpose.msra.mxu0 0.0
    %97 = vmatprep.subr.mxu0 0.0
    %98 = vmatpush2.xpose.msra.mxu0 0.0
    %99 = vmatprep.subr.mxu0 0.0
    %100 = vmatpush2.xpose.msra.mxu0 0.0
    %101 = vmatprep.subr.mxu0 0.0
    %102 = vmatpush2.xpose.msra.mxu0 0.0
    %103 = vmatprep.mubr.f32.mxu0 0.0
    %104 = vmatmul.mubr.f32.gmra.mxu0 %v15
    %v105 = vpop.f32.mrf.mxu0
    %v106 = vadd.f32 %v37, %v105
    %v107 = vpop.f32.mrf.mxu0
    %108 = vdwg.mxu0
    %109 = vst [vmem:[#allocation2] sm:$0xff] %v106
    // Predicated region
    $region14: #{fft_linear_forward.3} parent=1 // pred_check
      _
    $region15: #{fft_linear_forward.3} parent=1 // pred_check_branch
      %111 = sbr.rel (0) target = $region17
    $region16: #{fft_linear_forward.3} parent=1 // pred_region
      %s113 = ssub.s32 128, 128
      %114 = vsyncadd [#allocation3], %s113
      %s116 = sshll.u32 [#allocation2], 4
      %s117 = int_to_ptr.vmem [resolvable:$true] %s116
      %119 = dma.vmem_to_hbm [thread:$0]  %s117, 128, %s3, [#allocation3]
    $region17: #{fft_linear_forward.3} parent=1 // pred_fallthru
      _
    // Predicated region
    $region18: #{fft_linear_forward.3} parent=1 // pred_check
      _
    $region19: #{fft_linear_forward.3} parent=1 // pred_check_branch
      %121 = sbr.rel (0) target = $region21
    $region20: #{fft_linear_forward.3} parent=1 // pred_region
      %122 = dma.done [#allocation3], 128
    $region21: #{fft_linear_forward.3} parent=1 // pred_fallthru
      _
    %123 = vsyncpa [#allocation3], 1

</llo_original>
